<compile_context>
chip_gen: v5e
topology: v5e:2x2
jax: 0.10.0
libtpu: 0.0.40
codegen_flags: <defaults>
</compile_context>

<pallas_src>
import functools

import jax
import jax.numpy as jnp
from jax.experimental import pallas as pl
from jax.experimental.pallas import tpu as pltpu

_LANES = 128
_VMEM_LIMIT_BYTES = 48 * 1024 * 1024    # scoped VMEM limit: safe on v5e/v6e/v7x
_VMEM_BLOCK_BUDGET = 40 * 1024 * 1024   # budget for buffers + f32 temporaries


def _swish_kernel(x_ref, o_ref):
    # Compute in f32 (required on v5e: no bf16 VPU/EUP; matches torch.sigmoid).
    # Kernel is HBM-bound, so the upcast / exp (EUP slot) are free.
    xf = x_ref[...].astype(jnp.float32)
    y = xf * jax.nn.sigmoid(xf)
    # TODO(synk): integer dtypes would need round-to-nearest before the cast.
    o_ref[...] = y.astype(o_ref.dtype)


def _default_target_block_bytes() -> int:
    """Generation-aware HBM block size (trace-time query, safe fallback)."""
    try:
        info = pltpu.get_tpu_info()
        vmem = getattr(info, "vmem_capacity_bytes", None)
        if vmem is not None and vmem <= 64 * 1024 * 1024:
            # v7x-class TensorCore (64 MiB VMEM, ~3.2 TB/s HBM): bigger blocks
            # to amortize per-step overhead against the much faster HBM.
            return 6 * 1024 * 1024
    except Exception:
        pass
    # v5e / v6e (and generic fallback): ~4 MiB blocks. The explicit
    # vmem_limit_bytes keeps the 4x-block double-buffer legal on v5e.
    return 4 * 1024 * 1024


def _swish_blocks_2d(x2d: jax.Array, target_block_bytes: int) -> jax.Array:
    """Run the Swish kernel over a lane-dense (rows, 128) slab."""
    rows, lanes = x2d.shape
    itemsize = jnp.dtype(x2d.dtype).itemsize

    # Size the tile by HBM traffic (target_block_bytes of input per step) ...
    tile_rows = target_block_bytes // (lanes * itemsize)
    # ... but clamp so 4x in/out double buffers (input dtype) + ~2x block of
    # in-kernel f32 temporaries stay within the scoped-VMEM budget. This is
    # what shaves tile_rows for bf16/int8 inputs.
    max_rows = _VMEM_BLOCK_BUDGET // (lanes * (4 * itemsize + 2 * 4))
    tile_rows = min(tile_rows, max_rows)
    # Multiple of 32: dtype-safe minimum sublane tiling for f32/bf16/int8.
    tile_rows = max(32, (tile_rows // 32) * 32)

    if tile_rows >= rows:
        # Single block equal to the full array dims (allowed regardless of
        # (8,128) alignment).
        tile_rows = rows
    grid = (pl.cdiv(rows, tile_rows),)  # ragged tail block is masked; no divisor search

    n = rows * lanes
    cost = pl.CostEstimate(
        flops=4 * n,          # negate, add, reciprocal, mul (exp counted below)
        transcendentals=n,    # one exp per element
        bytes_accessed=2 * n * itemsize,
    )

    return pl.pallas_call(
        _swish_kernel,
        out_shape=jax.ShapeDtypeStruct((rows, lanes), x2d.dtype),
        grid_spec=pltpu.PrefetchScalarGridSpec(
            num_scalar_prefetch=0,
            grid=grid,
            in_specs=[pl.BlockSpec((tile_rows, lanes), lambda i: (i, 0))],
            out_specs=pl.BlockSpec((tile_rows, lanes), lambda i: (i, 0)),
        ),
        compiler_params=pltpu.CompilerParams(
            # Single parallel axis: lets v7x shard grid steps across its 2
            # TensorCores; harmless on single-TC v5e/v6e.
            # TODO(synk): verify dual-TC sharding on v7x in xprof; switch to
            # pltpu.CORE_PARALLEL / explicit core-split axis if it serializes.
            dimension_semantics=("parallel",),
            vmem_limit_bytes=_VMEM_LIMIT_BYTES,
        ),
        cost_estimate=cost,
    )(x2d)


@functools.partial(jax.jit, static_argnames=("target_block_bytes",))
def swish(x: jax.Array, *, target_block_bytes: int | None = None) -> jax.Array:
    """Swish/SiLU: x * sigmoid(x), elementwise. Accepts any shape/float dtype."""
    orig_shape = x.shape
    orig_dtype = x.dtype
    n = x.size
    if n == 0:
        return x
    if target_block_bytes is None:
        target_block_bytes = _default_target_block_bytes()

    x_flat = jnp.reshape(x, (-1,))          # free for contiguous arrays
    n_main = (n // _LANES) * _LANES
    n_tail = n - n_main

    if n_tail == 0:
        # Common case: zero-copy reshape to a lane-dense (rows, 128) slab.
        out2d = _swish_blocks_2d(x_flat.reshape(n // _LANES, _LANES),
                                 target_block_bytes)
        return out2d.reshape(orig_shape)

    # Ragged element count: run the kernel on the lane-aligned prefix and
    # handle the <128-element tail with a tiny plain-XLA epilogue, instead of
    # a whole-array pad + slice (each a full extra HBM pass on an HBM-bound op).
    parts = []
    if n_main > 0:
        main2d = x_flat[:n_main].reshape(n_main // _LANES, _LANES)
        parts.append(_swish_blocks_2d(main2d, target_block_bytes).reshape(-1))
    tail_f = x_flat[n_main:].astype(jnp.float32)
    parts.append((tail_f * jax.nn.sigmoid(tail_f)).astype(orig_dtype))
    out_flat = parts[0] if len(parts) == 1 else jnp.concatenate(parts)
    return out_flat.reshape(orig_shape)


def _swish_ref(x):
    xf = x.astype(jnp.float32)
    return (xf * jax.nn.sigmoid(xf)).astype(x.dtype)


if __name__ == "__main__":
    key = jax.random.PRNGKey(0)

    # 1) Small NCHW-like input, consistent with typical conv-net Swish usage.
    x = jax.random.normal(key, (2, 4, 16, 16), dtype=jnp.float32)
    y = jax.block_until_ready(swish(x))
    assert y.shape == x.shape and y.dtype == x.dtype
    assert jnp.allclose(y, _swish_ref(x), atol=1e-6, rtol=1e-6)

    # 2) Tiny ragged size (< 128 elements): pure epilogue path.
    x_tiny = jax.random.normal(jax.random.PRNGKey(1), (3, 5, 7), dtype=jnp.float32)
    y_tiny = jax.block_until_ready(swish(x_tiny))
    assert jnp.allclose(y_tiny, _swish_ref(x_tiny), atol=1e-6, rtol=1e-6)

    # 3) Ragged size with a lane-aligned main part (kernel prefix + tail epilogue).
    x_rag = jax.random.normal(jax.random.PRNGKey(2), (13, 103), dtype=jnp.float32)
    y_rag = jax.block_until_ready(swish(x_rag))
    assert jnp.allclose(y_rag, _swish_ref(x_rag), atol=1e-6, rtol=1e-6)

    # 4) Multi-block grid with a masked ragged tail block (small target block
    #    size purely to exercise the tiling path at test scale).
    x_big = jax.random.normal(jax.random.PRNGKey(3), (257, 1024), dtype=jnp.float32)
    y_big = jax.block_until_ready(swish(x_big, target_block_bytes=64 * 1024))
    assert jnp.allclose(y_big, _swish_ref(x_big), atol=1e-6, rtol=1e-6)

    # 5) bf16 path (f32 compute, cast back).
    x_bf = jax.random.normal(jax.random.PRNGKey(4), (8, 256), dtype=jnp.bfloat16)
    y_bf = jax.block_until_ready(swish(x_bf))
    assert y_bf.dtype == jnp.bfloat16
    assert jnp.allclose(y_bf.astype(jnp.float32),
                        _swish_ref(x_bf).astype(jnp.float32), atol=1e-2, rtol=1e-2)

    print("KERNEL_OK")
</pallas_src>

<mosaic_0001>
module attributes {stable_mosaic.version = 11 : i64} {
  func.func @_swish_kernel(%arg0: i32, %arg1: memref<16x128xf32, #tpu.memory_space<vmem>>, %arg2: memref<16x128xf32, #tpu.memory_space<vmem>>) attributes {dimension_semantics = [#tpu.dimension_semantics<parallel>], iteration_bounds = array<i64: 1>, scalar_prefetch = 0 : i64, scratch_operands = 0 : i64, tpu.core_type = #tpu.core_type<tc>, window_params = [{transform_indices = @transform_0, window_bounds = array<i64: 16, 128>}, {transform_indices = @transform_1, window_bounds = array<i64: 16, 128>}]} {
    %c0 = arith.constant 0 : index
    %c0_0 = arith.constant 0 : index
    %0 = vector.load %arg1[%c0, %c0_0] : memref<16x128xf32, #tpu.memory_space<vmem>>, vector<16x128xf32>
    %1 = arith.negf %0 : vector<16x128xf32>
    %2 = math.exp %1 : vector<16x128xf32>
    %cst = arith.constant 1.000000e+00 : f32
    %3 = vector.broadcast %cst : f32 to vector<16x128xf32>
    %4 = arith.addf %3, %2 : vector<16x128xf32>
    %5 = arith.divf %3, %4 : vector<16x128xf32>
    %6 = arith.mulf %0, %5 : vector<16x128xf32>
    %c0_1 = arith.constant 0 : index
    %c0_2 = arith.constant 0 : index
    %7 = vector.load %arg2[%c0_1, %c0_2] : memref<16x128xf32, #tpu.memory_space<vmem>>, vector<16x128xf32>
    tpu.vector_store %arg2[%c0_1, %c0_2], %6 {strides = array<i32>} : memref<16x128xf32, #tpu.memory_space<vmem>>, vector<16x128xf32>,
    return
  }
  func.func @transform_0(%arg0: i32) -> (i32, i32) {
    %c0_i32 = arith.constant 0 : i32
    %c0_i32_0 = arith.constant 0 : i32
    return %arg0, %c0_i32 : i32, i32
  }
  func.func @transform_1(%arg0: i32) -> (i32, i32) {
    %c0_i32 = arith.constant 0 : i32
    %c0_i32_0 = arith.constant 0 : i32
    return %arg0, %c0_i32 : i32, i32
  }
}

</mosaic_0001>

<llo_original>
// kernel: swish.1
$region0: #{swish.1}
  #allocation0 [shape = 'u32[]', space=smem, size = 0x4, offset = 0x4, fixed_abs, tag = 'smem constant byte address 0x4 - core index']
  #allocation1 [shape = 'u32[72,128]{1,0:T(1,128)}', space=vmem, size = 0x9000, scoped, tag = 'internal scratch']
  %s0 = inlined_call_operand.vmem [shape: f32[16,128], index: 0, kind: input, shape index: {}]
  %s1 = inlined_call_operand.vmem [shape: f32[16,128], index: 1, kind: output, shape index: {}]
  %s2 = sld [smem:[#allocation0]]
  $region14: #{swish.1} parent=0
    _
  %s4 = ssub.s32 1, %s2
  %s5 = scalar_select 0, %s4, %s2
  // Predicated region
  $region2: #{swish.1} parent=0 // pred_check
    _
  $region3: #{swish.1} parent=0 // pred_check_branch
    %7 = sbr.rel (0) target = $region5
  $region4: #{swish.1} parent=0 // pred_region
    _
  $region5: #{swish.1} parent=0 // pred_fallthru
    _
  %v8 = vld [vmem:[%s0] sm:$0xff]
  %v9 = vld [vmem:[%s0 + $0x8] sm:$0xff]
  %v10 = vxor.u32 %v8, 2147483648
  %v11 = vxor.u32 %v9, 2147483648
  %v12 = vmul.f32 %v10, 1.442695
  %v13 = vpow.pop %v12
  %v14 = vmul.f32 %v11, 1.442695
  %v15 = vpow.pop %v14
  %v16 = vadd.f32 %v13, 1.0
  %v17 = vadd.f32 %v15, 1.0
  %v18 = vrcp.pop %v16
  %v19 = vmul.f32 %v16, %v18
  %v20 = vsub.f32 1.0, %v19
  %v21 = vmul.f32 %v18, %v20
  %v22 = vadd.f32 %v18, %v21
  %vm23 = vweird.f32 %v16
  %vm24 = vweird.f32 %v18
  %vm25 = vmor %vm23, %vm24
  %v26 = vsel %vm25, %v18, %v22
  %v27 = vand.u32 2147483647, %v16
  %vm28 = vcmp.eq.f32.partialorder %v27, 8.507059e+37
  %v29 = vand.u32 %v16, 2147483648
  %v30 = vor.u32 1.1754944e-38, %v29
  %v31 = vsel %vm28, %v30, %v26
  %v32 = vmul.f32 1.0, %v31
  %v33 = vrcp.pop %v17
  %v34 = vmul.f32 %v17, %v33
  %v35 = vsub.f32 1.0, %v34
  %v36 = vmul.f32 %v33, %v35
  %v37 = vadd.f32 %v33, %v36
  %vm38 = vweird.f32 %v17
  %vm39 = vweird.f32 %v33
  %vm40 = vmor %vm38, %vm39
  %v41 = vsel %vm40, %v33, %v37
  %v42 = vand.u32 2147483647, %v17
  %vm43 = vcmp.eq.f32.partialorder %v42, 8.507059e+37
  %v44 = vand.u32 %v17, 2147483648
  %v45 = vor.u32 1.1754944e-38, %v44
  %v46 = vsel %vm43, %v45, %v41
  %v47 = vmul.f32 1.0, %v46
  %v48 = vmul.f32 %v8, %v32
  %v49 = vmul.f32 %v9, %v47
  %50 = vst [vmem:[%s1] sm:$0xff] %v48
  %51 = vst [vmem:[%s1 + $0x8] sm:$0xff] %v49
  // Predicated region
  $region6: #{swish.1} parent=0 // pred_check
    _
  $region7: #{swish.1} parent=0 // pred_check_branch
    %53 = sbr.rel (0) target = $region9
  $region8: #{swish.1} parent=0 // pred_region
    _
  $region9: #{swish.1} parent=0 // pred_fallthru
    _
  // Predicated region
  $region10: #{swish.1} parent=0 // pred_check
    _
  $region11: #{swish.1} parent=0 // pred_check_branch
    %55 = sbr.rel (0) target = $region13
  $region12: #{swish.1} parent=0 // pred_region
    _
  $region13: #{swish.1} parent=0 // pred_fallthru
    _

</llo_original>
